<compile_context>
chip_gen: v7x
topology: tpu7x:2x2x1
jax: 0.10.0
libtpu: 0.0.40
codegen_flags: <defaults>
</compile_context>

<pallas_src>
import jax
import jax.numpy as jnp
from jax.experimental import pallas as pl
from jax.experimental.pallas import tpu as pltpu

_LANE = 128
_SUBLANE = 8
_MAX_TILE_ROWS = 1024  # 1024x128 f32 = 512 KiB/buffer -> safe on every generation


def _nonlinear_kernel(s_ref, x_ref, o_ref):
    # s_ref : SMEM (2,) -> [log(a1), a2]   (scalar reads first)
    # x_ref : VMEM (tile_rows, 128)
    # o_ref : VMEM (tile_rows, 128)
    log_a1 = s_ref[0]
    a2 = s_ref[1]
    x = x_ref[...]
    # y = a1**x + x**a2 + exp(x)
    #   a1**x == exp(x * log_a1)  (same NaN semantics as torch/jnp for a1 <= 0)
    o_ref[...] = jnp.exp(x * log_a1) + jnp.power(x, a2) + jnp.exp(x)


def nonlinear_forward(x, a1, a2):
    """x: (N, 1) float32; a1, a2: scalar float32 params. Returns (N, 1)."""
    n = x.shape[0]
    dtype = x.dtype

    # ---- lane-dense repack: (N, 1) -> (rows_padded, 128) slab ----
    rows = max(-(-n // _LANE), _SUBLANE)
    rows = -(-rows // _SUBLANE) * _SUBLANE                 # multiple of 8
    tile_rows = min(_MAX_TILE_ROWS, rows)
    rows_padded = -(-rows // tile_rows) * tile_rows        # multiple of tile
    padded_elems = rows_padded * _LANE

    flat = jnp.reshape(x, (n,))
    # pad with 1.0: a1**1, 1**a2, exp(1) are all finite -> no inf/NaN leakage
    flat = jnp.pad(flat, (0, padded_elems - n), constant_values=1.0)
    x2d = jnp.reshape(flat, (rows_padded, _LANE))

    # hoist log(a1) once (jnp.power(a1, x) would recompute it per element)
    a1f = jnp.asarray(a1, dtype=jnp.float32)
    a2f = jnp.asarray(a2, dtype=jnp.float32)
    params = jnp.stack([jnp.log(a1f), a2f]).reshape(2)

    grid = (rows_padded // tile_rows,)
    y2d = pl.pallas_call(
        _nonlinear_kernel,
        out_shape=jax.ShapeDtypeStruct((rows_padded, _LANE), dtype),
        grid_spec=pltpu.PrefetchScalarGridSpec(
            num_scalar_prefetch=0,
            grid=grid,
            in_specs=[
                pl.BlockSpec(memory_space=pltpu.SMEM),               # [log_a1, a2]
                pl.BlockSpec((tile_rows, _LANE), lambda i: (i, 0)),  # lane-dense tile
            ],
            out_specs=pl.BlockSpec((tile_rows, _LANE), lambda i: (i, 0)),
        ),
        compiler_params=pltpu.CompilerParams(
            dimension_semantics=("parallel",)),
    )(params, x2d)

    return jnp.reshape(jnp.reshape(y2d, (padded_elems,))[:n], (n, 1))


def nonlinear_reference(x, a1, a2):
    return jnp.power(a1, x) + jnp.power(x, a2) + jnp.exp(x)


if __name__ == "__main__":
    key = jax.random.PRNGKey(0)
    kx, k1, k2 = jax.random.split(key, 3)

    num = 100
    # x = torch.rand(num, 1) * 10 + 0.001  (positive inputs)
    x = jax.random.uniform(kx, (num, 1), dtype=jnp.float32) * 10.0 + 0.001

    # Deterministic parameter init (torch.randn(1)); abs(a1)+0.1 keeps a1**x
    # finite (negative base + non-integer exponent is NaN in both frameworks).
    a1 = jnp.abs(jax.random.normal(k1, (), dtype=jnp.float32)) + 0.1
    a2 = jax.random.normal(k2, (), dtype=jnp.float32)

    y = nonlinear_forward(x, a1, a2)
    y = jax.block_until_ready(y)

    y_ref = nonlinear_reference(x, a1, a2)
    assert y.shape == (num, 1)
    assert jnp.allclose(y, y_ref, rtol=1e-4, atol=1e-4), "mismatch vs reference"

    print("KERNEL_OK")
</pallas_src>

<mosaic_0001>
module attributes {stable_mosaic.version = 11 : i64} {
  func.func @_nonlinear_kernel(%arg0: i32, %arg1: memref<2xf32, #tpu.memory_space<smem>>, %arg2: memref<8x128xf32, #tpu.memory_space<vmem>>, %arg3: memref<8x128xf32, #tpu.memory_space<vmem>>) attributes {dimension_semantics = [#tpu.dimension_semantics<parallel>], iteration_bounds = array<i64: 1>, scalar_prefetch = 0 : i64, scratch_operands = 0 : i64, tpu.core_type = #tpu.core_type<tc>, window_params = [{transform_indices = @transform_0, window_bounds = array<i64: 2>}, {transform_indices = @transform_1, window_bounds = array<i64: 8, 128>}, {transform_indices = @transform_2, window_bounds = array<i64: 8, 128>}]} {
    %c0 = arith.constant 0 : index
    %0 = memref.load %arg1[%c0] : memref<2xf32, #tpu.memory_space<smem>>
    %c1 = arith.constant 1 : index
    %1 = memref.load %arg1[%c1] : memref<2xf32, #tpu.memory_space<smem>>
    %c0_0 = arith.constant 0 : index
    %c0_1 = arith.constant 0 : index
    %2 = vector.load %arg2[%c0_0, %c0_1] : memref<8x128xf32, #tpu.memory_space<vmem>>, vector<8x128xf32>
    %3 = vector.broadcast %0 : f32 to vector<8x128xf32>
    %4 = arith.mulf %2, %3 : vector<8x128xf32>
    %5 = math.exp %4 : vector<8x128xf32>
    %6 = vector.broadcast %1 : f32 to vector<8x128xf32>
    %7 = math.powf %2, %6 : vector<8x128xf32>
    %8 = arith.addf %5, %7 : vector<8x128xf32>
    %9 = math.exp %2 : vector<8x128xf32>
    %10 = arith.addf %8, %9 : vector<8x128xf32>
    %c0_2 = arith.constant 0 : index
    %c0_3 = arith.constant 0 : index
    %11 = vector.load %arg3[%c0_2, %c0_3] : memref<8x128xf32, #tpu.memory_space<vmem>>, vector<8x128xf32>
    tpu.vector_store %arg3[%c0_2, %c0_3], %10 {strides = array<i32>} : memref<8x128xf32, #tpu.memory_space<vmem>>, vector<8x128xf32>,
    return
  }
  func.func @transform_0(%arg0: i32) -> i32 {
    %c0_i32 = arith.constant 0 : i32
    %c0_i32_0 = arith.constant 0 : i32
    return %c0_i32 : i32
  }
  func.func @transform_1(%arg0: i32) -> (i32, i32) {
    %c0_i32 = arith.constant 0 : i32
    %c0_i32_0 = arith.constant 0 : i32
    return %arg0, %c0_i32 : i32, i32
  }
  func.func @transform_2(%arg0: i32) -> (i32, i32) {
    %c0_i32 = arith.constant 0 : i32
    %c0_i32_0 = arith.constant 0 : i32
    return %arg0, %c0_i32 : i32, i32
  }
}

</mosaic_0001>

<llo_original>
// kernel: tpu_custom_call.1
$region0: #{tpu_custom_call.1}
  #allocation0 [shape = 'u32[]', space=smem, size = 0x4, offset = 0x4, fixed_abs, tag = 'smem constant byte address 0x4 - core index']
  #allocation1 [shape = 'u32[144,128]{1,0:T(1,128)}', space=vmem, size = 0x12000, scoped, tag = 'internal scratch']
  %s0 = inlined_call_operand.hbm [shape: f32[2], index: 0, kind: input, shape index: {}]
  %s1 = inlined_call_operand.hbm [shape: f32[8,128], index: 1, kind: input, shape index: {}]
  %s2 = inlined_call_operand.hbm [shape: f32[8,128], index: 2, kind: output, shape index: {}]
  %s3 = sld [smem:[#allocation0]]
  $region26: #{tpu_custom_call.1} parent=0
    _
  %s5 = ssub.s32 1, %s3
  %s6 = scalar_select 0, %s5, %s3
  $region1: #{tpu_custom_call.1} parent=0
    #allocation2 [shape = 'u8[512]{0}', space=smem, size = 0x200, scoped, tag = 'input window, operand 0, single buffered']
    #allocation3 [shape = 's32[1]{0}', space=sflag, size = 0x4, scoped, tag = 'scoped memory for tpu_custom_call.1']
    #allocation4 [shape = 's32[1]{0}', space=sflag, size = 0x4, scoped, tag = 'scoped memory for tpu_custom_call.1']
    #allocation5 [shape = 's32[1]{0}', space=sflag, size = 0x4, scoped, tag = 'scoped memory for tpu_custom_call.1']
    #allocation6 [shape = 'u8[4096]{0}', space=vmem, size = 0x1000, scoped, tag = 'input window, operand 1, single buffered']
    #allocation7 [shape = 'u8[4096]{0}', space=vmem, size = 0x1000, scoped, tag = 'output window, operand 0, single buffered']
    %7 = vsyncpa [#allocation5], 0
    %8 = vsyncpa [#allocation3], 0
    %9 = vsyncpa [#allocation4], 0
    // Predicated region
    $region2: #{tpu_custom_call.1} parent=1 // pred_check
      _
    $region3: #{tpu_custom_call.1} parent=1 // pred_check_branch
      %11 = sbr.rel (0) target = $region5
    $region4: #{tpu_custom_call.1} parent=1 // pred_region
      %s13 = ssub.s32 16, 16
      %14 = vsyncadd [#allocation5], %s13
      %17 = dma.hbm_to_smem %s0, 16, [#allocation2], [#allocation5]
    $region5: #{tpu_custom_call.1} parent=1 // pred_fallthru
      _
    // Predicated region
    $region6: #{tpu_custom_call.1} parent=1 // pred_check
      _
    $region7: #{tpu_custom_call.1} parent=1 // pred_check_branch
      %19 = sbr.rel (0) target = $region9
    $region8: #{tpu_custom_call.1} parent=1 // pred_region
      %s21 = ssub.s32 128, 128
      %22 = vsyncadd [#allocation3], %s21
      %s24 = sshll.u32 [#allocation6], 4
      %s25 = int_to_ptr.vmem [resolvable:$true] %s24
      %27 = dma.hbm_to_vmem [thread:$0]  %s1, 128, %s25, [#allocation3]
    $region9: #{tpu_custom_call.1} parent=1 // pred_fallthru
      _
    // Predicated region
    $region10: #{tpu_custom_call.1} parent=1 // pred_check
      _
    $region11: #{tpu_custom_call.1} parent=1 // pred_check_branch
      %29 = sbr.rel (0) target = $region13
    $region12: #{tpu_custom_call.1} parent=1 // pred_region
      %30 = dma.done [#allocation5], 16
    $region13: #{tpu_custom_call.1} parent=1 // pred_fallthru
      _
    // Predicated region
    $region14: #{tpu_custom_call.1} parent=1 // pred_check
      _
    $region15: #{tpu_custom_call.1} parent=1 // pred_check_branch
      %32 = sbr.rel (0) target = $region17
    $region16: #{tpu_custom_call.1} parent=1 // pred_region
      %33 = dma.done [#allocation3], 128
    $region17: #{tpu_custom_call.1} parent=1 // pred_fallthru
      _
    %34 = sfence
    %s35 = sld [smem:[#allocation2]]
    %s36 = sld [smem:[#allocation2 + $0x1]]
    %v37 = vld [vmem:[#allocation6] sm:$0xff]
    %v38 = vstv %s35
    %v39 = vmul.f32 %v37, %v38
    %v40 = vmul.f32 %v39, 1.442695
    %v41 = vpow.pop %v40
    %v42 = vstv %s36
    %v43 = vpow.f32 %v37, %v42
    %v44 = vadd.f32 %v41, %v43
    %v45 = vmul.f32 %v37, 1.442695
    %v46 = vpow.pop %v45
    %v47 = vadd.f32 %v44, %v46
    %48 = vst [vmem:[#allocation7] sm:$0xff] %v47
    // Predicated region
    $region18: #{tpu_custom_call.1} parent=1 // pred_check
      _
    $region19: #{tpu_custom_call.1} parent=1 // pred_check_branch
      %50 = sbr.rel (0) target = $region21
    $region20: #{tpu_custom_call.1} parent=1 // pred_region
      %s52 = ssub.s32 128, 128
      %53 = vsyncadd [#allocation4], %s52
      %s55 = sshll.u32 [#allocation7], 4
      %s56 = int_to_ptr.vmem [resolvable:$true] %s55
      %58 = dma.vmem_to_hbm [thread:$0]  %s56, 128, %s2, [#allocation4]
    $region21: #{tpu_custom_call.1} parent=1 // pred_fallthru
      _
    // Predicated region
    $region22: #{tpu_custom_call.1} parent=1 // pred_check
      _
    $region23: #{tpu_custom_call.1} parent=1 // pred_check_branch
      %60 = sbr.rel (0) target = $region25
    $region24: #{tpu_custom_call.1} parent=1 // pred_region
      %61 = dma.done [#allocation4], 128
    $region25: #{tpu_custom_call.1} parent=1 // pred_fallthru
      _
    %62 = vsyncpa [#allocation3], 1
    %63 = vsyncpa [#allocation4], 1
    %64 = vsyncpa [#allocation5], 1

</llo_original>
